<compile_context>
chip_gen: v6e
topology: v6e:2x2x1
jax: 0.10.0
libtpu: 0.0.40
codegen_flags: <defaults>
</compile_context>

<pallas_src>
import jax
import jax.numpy as jnp
import numpy as np
from jax import lax
from jax.experimental import pallas as pl
from jax.experimental.pallas import tpu as pltpu

_LANE = 128


# ---------------------------------------------------------------------------
# Pallas kernel: per-neighbor pointwise MLP (folded 1x1 conv + bias + ReLU chain),
# with the max-over-K reduction carried in a VMEM scratch accumulator across the
# innermost ("arbitrary") grid axis.
# ---------------------------------------------------------------------------
def make_msg_mlp_kernel(num_layers):
    def kernel(*refs):
        x_ref = refs[0]                          # (Cin, TM) bf16   (K squeezed by BlockSpec)
        out_ref = refs[1 + 2 * num_layers]       # (Cout_last, TM) f32
        acc_ref = refs[2 + 2 * num_layers]       # (Cout_last, TM) f32 VMEM scratch

        k = pl.program_id(1)

        h = x_ref[...]                           # (Cin, TM) bf16
        for j in range(num_layers):
            w = refs[1 + 2 * j][...]             # (Cout_j, Cin_j) bf16
            b = refs[2 + 2 * j][...]             # (Cout_j, 1)     f32
            # 2-D MXU matmul, f32 accumulation; lane axis = TM (lane-dense).
            y = jnp.dot(w, h, preferred_element_type=jnp.float32)
            y = jnp.maximum(y + b, 0.0)          # bias + ReLU in f32 (VPU)
            h = y.astype(jnp.bfloat16) if j < num_layers - 1 else y

        @pl.when(k == 0)
        def _():
            acc_ref[...] = h                     # init running max

        @pl.when(k > 0)
        def _():
            acc_ref[...] = jnp.maximum(acc_ref[...], h)

        @pl.when(k == pl.num_programs(1) - 1)
        def _():
            out_ref[...] = acc_ref[...]          # single lane-dense write-back per M-slab

    return kernel


def _choose_tiling(M, Cin, couts):
    """Pick a 128-aligned M-tile (dividing the 128-padded M) and a per-generation VMEM budget."""
    try:
        vmem_bytes = int(pltpu.get_tpu_info().vmem_capacity_bytes)
    except Exception:
        vmem_bytes = 64 * 1024 * 1024                       # conservative (v7x) fallback
    if vmem_bytes >= 96 * 1024 * 1024:                      # v5e / v6e: 128 MiB VMEM per core
        tm_cap, vmem_budget = 1024, 48 * 1024 * 1024
    else:                                                   # v7x: 64 MiB VMEM per core
        tm_cap, vmem_budget = 512, 24 * 1024 * 1024

    cmax = max(couts)
    cin16 = -(-Cin // 16) * 16                              # bf16 sublane padding of input block
    cout8 = -(-cmax // 8) * 8
    # Per lane-column VMEM: double-buffered bf16 input block + double-buffered f32 output
    # block + f32 scratch accumulator + ~2 live f32 activation slabs inside the MLP chain.
    bytes_per_col = 4 * cin16 + 12 * cout8 + 8 * cmax
    # Resident weights/biases (double-buffered, layout-padded) + fixed pipeline slack.
    slack = 2 * 1024 * 1024
    cins = [Cin] + couts[:-1]
    for co, ci in zip(couts, cins):
        slack += 2 * (-(-co // 16) * 16) * (-(-ci // 128) * 128) * 2   # bf16 weights
        slack += 2 * (-(-co // 8) * 8) * 128 * 4                       # f32 biases
    cols = max(_LANE, (vmem_budget - slack) // max(bytes_per_col, 1))
    tm_cap = max(_LANE, min(tm_cap, (int(cols) // _LANE) * _LANE))

    Mpad = -(-M // _LANE) * _LANE
    q = Mpad // _LANE
    dmax = max(1, tm_cap // _LANE)
    divs = [d for d in range(1, min(q, dmax) + 1) if q % d == 0]
    tm_blocks = divs[-1]
    # Keep >= 2 M-steps when it does not force tiny (<256) tiles, so v7x's two
    # TensorCores both get work on the "parallel" axis (negligible cost on v5e/v6e).
    multi = [d for d in divs if q // d >= 2]
    if multi and multi[-1] >= 2:
        tm_blocks = multi[-1]
    return tm_blocks * _LANE, Mpad, vmem_budget


def mlp_maxpool_pallas(grouped_kcm, weights_t, biases):
    """grouped_kcm: [K, Cin, M] (ideally already bf16); weights_t[j]: [Cout_j, Cin_j]; biases[j]: [Cout_j, 1]."""
    K, Cin, M = grouped_kcm.shape
    num_layers = len(weights_t)
    couts = [int(w.shape[0]) for w in weights_t]
    Cout = couts[-1]

    tm, Mpad, vmem_budget = _choose_tiling(M, Cin, couts)

    x = grouped_kcm if grouped_kcm.dtype == jnp.bfloat16 else grouped_kcm.astype(jnp.bfloat16)
    if Mpad != M:
        # Pad only to the next 128-lane multiple (tm divides Mpad by construction).
        x = jnp.pad(x, ((0, 0), (0, 0), (0, Mpad - M)))

    in_specs = [pl.BlockSpec((None, Cin, tm), lambda i, k: (k, 0, i))]   # (Cin, tm) per neighbor
    args = [x]
    for w, b in zip(weights_t, biases):
        wb = w.astype(jnp.bfloat16)
        bb = b.astype(jnp.float32)
        in_specs.append(pl.BlockSpec(wb.shape, lambda i, k: (0, 0)))     # resident across grid
        in_specs.append(pl.BlockSpec(bb.shape, lambda i, k: (0, 0)))
        args += [wb, bb]
    out_spec = pl.BlockSpec((Cout, tm), lambda i, k: (0, i))             # lane-dense output stores

    out = pl.pallas_call(
        make_msg_mlp_kernel(num_layers),
        out_shape=jax.ShapeDtypeStruct((Cout, Mpad), jnp.float32),
        grid_spec=pltpu.PrefetchScalarGridSpec(
            num_scalar_prefetch=0,
            grid=(Mpad // tm, K),                                        # reduction axis (K) last
            in_specs=in_specs,
            out_specs=out_spec,
            scratch_shapes=[pltpu.VMEM((Cout, tm), jnp.float32)],        # running-max accumulator
        ),
        compiler_params=pltpu.CompilerParams(
            dimension_semantics=("parallel", "arbitrary"),
            vmem_limit_bytes=int(vmem_budget)),
    )(*args)
    return out[:, :M]


def _mlp_maxpool_ref(grouped_kcm, weights_t, biases):
    """Pure-JAX reference with identical precision policy (bf16 MXU inputs, f32 accum)."""
    num_layers = len(weights_t)
    h = grouped_kcm.astype(jnp.bfloat16)                        # (K, Cin, M)
    for j, (w, b) in enumerate(zip(weights_t, biases)):
        y = jnp.einsum('oc,kcm->kom', w.astype(jnp.bfloat16), h,
                       preferred_element_type=jnp.float32)
        y = jnp.maximum(y + b.astype(jnp.float32)[None, :, :], 0.0)
        h = y if j == num_layers - 1 else y.astype(jnp.bfloat16)
    return jnp.max(h, axis=0)                                   # (Cout, M)


# ---------------------------------------------------------------------------
# Plain-JAX glue: FPS, gather, ball query (data-dependent / sequential).
# ---------------------------------------------------------------------------
def farthest_point_sample(xyz, npoint):
    # xyz: [B, N, 3]
    B, N, _ = xyz.shape

    def body(i, state):
        centroids, distance, farthest = state
        centroids = centroids.at[:, i].set(farthest)
        idx = jnp.broadcast_to(farthest[:, None, None], (B, 1, 3))
        centroid = jnp.take_along_axis(xyz, idx, axis=1)          # [B,1,3]
        dist = jnp.sum((xyz - centroid) ** 2, -1)
        distance = jnp.minimum(distance, dist)
        farthest = jnp.argmax(distance, axis=-1).astype(jnp.int32)
        return centroids, distance, farthest

    # TODO(synk): torch uses randint() for the starting index; fixed at 0 for determinism.
    init = (jnp.zeros((B, npoint), jnp.int32),
            jnp.full((B, N), 1e10, jnp.float32),
            jnp.zeros((B,), jnp.int32))
    centroids, _, _ = jax.lax.fori_loop(0, npoint, body, init)
    return centroids


def index_points(points, idx):
    # points: [B, N, C], idx: [B, ...] -> [B, ..., C]
    B = points.shape[0]
    C = points.shape[-1]
    idx_flat = idx.reshape(B, -1).astype(jnp.int32)
    gather_idx = jnp.broadcast_to(idx_flat[:, :, None], (B, idx_flat.shape[1], C))
    out = jnp.take_along_axis(points, gather_idx, axis=1)
    return out.reshape(idx.shape + (C,))


def square_distance(src, dst):
    dist = -2.0 * jnp.matmul(src, jnp.swapaxes(dst, 1, 2))
    dist = dist + jnp.sum(src ** 2, -1)[:, :, None]
    dist = dist + jnp.sum(dst ** 2, -1)[:, None, :]
    return dist


def query_ball_point(radius, nsample, xyz, new_xyz):
    B, N, _ = xyz.shape
    sqrdists = square_distance(new_xyz, xyz)                       # [B, S, N]
    arange = jnp.arange(N, dtype=jnp.int32)[None, None, :]
    group_idx = jnp.where(sqrdists > radius ** 2, jnp.int32(N), arange)
    group_idx = jnp.sort(group_idx, axis=-1)[:, :, :nsample]
    group_first = group_idx[:, :, 0:1]
    group_idx = jnp.where(group_idx == N, group_first, group_idx)
    return group_idx


# ---------------------------------------------------------------------------
# Module
# ---------------------------------------------------------------------------
class PointNetSetAbstractionMsgPallas:
    def __init__(self, npoint, radius_list, nsample_list, in_channel, mlp_list, key):
        self.npoint = npoint
        self.radius_list = radius_list
        self.nsample_list = nsample_list
        self.params = []  # per scale: list of (Wt_folded [Cout,Cin], b_folded [Cout,1])
        eps = 1e-5
        for i, mlp in enumerate(mlp_list):
            layers = []
            last = in_channel + 3
            for out_ch in mlp:
                key, k1, k2 = jax.random.split(key, 3)
                w = jax.random.normal(k1, (out_ch, last), jnp.float32) * 0.1
                b_conv = jax.random.normal(k2, (out_ch,), jnp.float32) * 0.01
                gamma = jnp.ones((out_ch,), jnp.float32)
                beta = jnp.zeros((out_ch,), jnp.float32)
                mean = jnp.zeros((out_ch,), jnp.float32)
                var = jnp.ones((out_ch,), jnp.float32)
                # TODO(synk): BatchNorm implemented in eval/inference (folded) form, not training-mode batch statistics.
                scale = gamma / jnp.sqrt(var + eps)
                w_f = w * scale[:, None]                                # (Cout, Cin)
                b_f = (b_conv * scale + beta - mean * scale)[:, None]   # (Cout, 1)
                layers.append((w_f, b_f))
                last = out_ch
            self.params.append(layers)

    def __call__(self, xyz, points, use_pallas=True):
        # xyz: [B, 3, N], points: [B, D, N]  (PyTorch input convention)
        xyz_t = jnp.transpose(xyz, (0, 2, 1))                      # [B, N, 3]
        pts_t = jnp.transpose(points, (0, 2, 1)) if points is not None else None
        B, N, _ = xyz_t.shape
        S = self.npoint
        fps_idx = farthest_point_sample(xyz_t, S)
        new_xyz = index_points(xyz_t, fps_idx)                     # [B, S, 3]
        feats = []
        # TODO(synk): the ball-query gather/concat still materializes the grouped tensor in HBM;
        # fusing it into the kernel (scalar-prefetched group_idx + manual DMA gather) is a
        # further structural win not implemented here.
        for i, radius in enumerate(self.radius_list):
            K = self.nsample_list[i]
            group_idx = query_ball_point(radius, K, xyz_t, new_xyz)
            grouped_xyz = index_points(xyz_t, group_idx) - new_xyz[:, :, None, :]
            if pts_t is not None:
                grouped_points = jnp.concatenate(
                    [index_points(pts_t, group_idx), grouped_xyz], axis=-1)
            else:
                grouped_points = grouped_xyz
            Cin = grouped_points.shape[-1]
            # bf16 cast *before* the big permute so it fuses with the gather/subtract/concat
            # producer and the transpose moves half the bytes.  Kernel layout: [K, Cin, M],
            # M = B*S lane-dense.
            grouped_kcm = jnp.transpose(
                grouped_points.astype(jnp.bfloat16), (2, 3, 0, 1)).reshape(K, Cin, B * S)
            weights_t = [w for (w, _) in self.params[i]]
            biases = [b for (_, b) in self.params[i]]
            if use_pallas:
                pooled = mlp_maxpool_pallas(grouped_kcm, weights_t, biases)   # (Cout, B*S)
            else:
                pooled = _mlp_maxpool_ref(grouped_kcm, weights_t, biases)
            feats.append(jnp.transpose(pooled.reshape(-1, B, S), (1, 0, 2)))  # (B, Cout, S)
        new_points_concat = jnp.concatenate(feats, axis=1)                     # [B, D', S]
        new_xyz_out = jnp.transpose(new_xyz, (0, 2, 1))                        # [B, 3, S]
        return new_xyz_out, new_points_concat


if __name__ == "__main__":
    key = jax.random.PRNGKey(0)
    k_xyz, k_pts, k_param = jax.random.split(key, 3)

    B, N, D = 2, 16, 4
    npoint = 8
    radius_list = [0.4, 0.8]
    nsample_list = [8, 16]
    mlp_list = [[16, 16, 32], [16, 32, 32]]

    xyz = jax.random.uniform(k_xyz, (B, 3, N), jnp.float32)       # [B, 3, N]
    points = jax.random.normal(k_pts, (B, D, N), jnp.float32)     # [B, D, N]

    module = PointNetSetAbstractionMsgPallas(npoint, radius_list, nsample_list,
                                             D, mlp_list, k_param)

    new_xyz, new_feat = module(xyz, points, use_pallas=True)
    new_xyz, new_feat = jax.block_until_ready((new_xyz, new_feat))

    # sanity: compare hot path against a pure-JAX reference with the same precision policy
    ref_xyz, ref_feat = module(xyz, points, use_pallas=False)
    np.testing.assert_allclose(np.asarray(new_xyz), np.asarray(ref_xyz), rtol=1e-5, atol=1e-5)
    np.testing.assert_allclose(np.asarray(new_feat), np.asarray(ref_feat), rtol=1e-3, atol=1e-3)

    assert new_xyz.shape == (B, 3, npoint)
    assert new_feat.shape == (B, mlp_list[0][-1] + mlp_list[1][-1], npoint)

    print("KERNEL_OK")
</pallas_src>

<mosaic_0001>
module attributes {stable_mosaic.version = 11 : i64} {
  func.func @kernel(%arg0: i32, %arg1: i32, %arg2: memref<1x7x128xbf16, #tpu.memory_space<vmem>>, %arg3: memref<16x7xbf16, #tpu.memory_space<vmem>>, %arg4: memref<16x1xf32, #tpu.memory_space<vmem>>, %arg5: memref<16x16xbf16, #tpu.memory_space<vmem>>, %arg6: memref<16x1xf32, #tpu.memory_space<vmem>>, %arg7: memref<32x16xbf16, #tpu.memory_space<vmem>>, %arg8: memref<32x1xf32, #tpu.memory_space<vmem>>, %arg9: memref<32x128xf32, #tpu.memory_space<vmem>>, %arg10: memref<32x128xf32, #tpu.memory_space<vmem>>) attributes {dimension_semantics = [#tpu.dimension_semantics<parallel>, #tpu.dimension_semantics<arbitrary>], iteration_bounds = array<i64: 1, 8>, scalar_prefetch = 0 : i64, scratch_operands = 1 : i64, tpu.core_type = #tpu.core_type<tc>, window_params = [{transform_indices = @transform_0, window_bounds = array<i64: 1, 7, 128>}, {pipeline_mode = #tpu.pipeline_mode<synchronous>, transform_indices = @transform_1, window_bounds = array<i64: 16, 7>}, {pipeline_mode = #tpu.pipeline_mode<synchronous>, transform_indices = @transform_2, window_bounds = array<i64: 16, 1>}, {pipeline_mode = #tpu.pipeline_mode<synchronous>, transform_indices = @transform_3, window_bounds = array<i64: 16, 16>}, {pipeline_mode = #tpu.pipeline_mode<synchronous>, transform_indices = @transform_4, window_bounds = array<i64: 16, 1>}, {pipeline_mode = #tpu.pipeline_mode<synchronous>, transform_indices = @transform_5, window_bounds = array<i64: 32, 16>}, {pipeline_mode = #tpu.pipeline_mode<synchronous>, transform_indices = @transform_6, window_bounds = array<i64: 32, 1>}, {transform_indices = @transform_7, window_bounds = array<i64: 32, 128>}]} {
    %c0 = arith.constant 0 : index
    %c0_0 = arith.constant 0 : index
    %c0_1 = arith.constant 0 : index
    %0 = vector.load %arg2[%c0, %c0_0, %c0_1] : memref<1x7x128xbf16, #tpu.memory_space<vmem>>, vector<1x7x128xbf16>
    %1 = vector.shape_cast %0 : vector<1x7x128xbf16> to vector<7x128xbf16>
    %c0_2 = arith.constant 0 : index
    %c0_3 = arith.constant 0 : index
    %2 = vector.load %arg3[%c0_2, %c0_3] : memref<16x7xbf16, #tpu.memory_space<vmem>>, vector<16x7xbf16>
    %c0_4 = arith.constant 0 : index
    %c0_5 = arith.constant 0 : index
    %3 = vector.load %arg4[%c0_4, %c0_5] : memref<16x1xf32, #tpu.memory_space<vmem>>, vector<16x1xf32>
    %cst = arith.constant dense<0.000000e+00> : vector<16x128xf32>
    %4 = tpu.matmul %2, %1, %cst {dimension_numbers = #tpu.dot_dimension_numbers<[1], [0], [0], [1], [0, 0, 1, 1], [], []>} : vector<16x7xbf16>, vector<7x128xbf16>, vector<16x128xf32> -> vector<16x128xf32>
    %5 = vector.broadcast %3 : vector<16x1xf32> to vector<16x128xf32>
    %6 = arith.addf %4, %5 : vector<16x128xf32>
    %cst_6 = arith.constant 0.000000e+00 : f32
    %7 = vector.broadcast %cst_6 : f32 to vector<16x128xf32>
    %8 = arith.maximumf %6, %7 : vector<16x128xf32>
    %9 = arith.truncf %8 : vector<16x128xf32> to vector<16x128xbf16>
    %c0_7 = arith.constant 0 : index
    %c0_8 = arith.constant 0 : index
    %10 = vector.load %arg5[%c0_7, %c0_8] : memref<16x16xbf16, #tpu.memory_space<vmem>>, vector<16x16xbf16>
    %c0_9 = arith.constant 0 : index
    %c0_10 = arith.constant 0 : index
    %11 = vector.load %arg6[%c0_9, %c0_10] : memref<16x1xf32, #tpu.memory_space<vmem>>, vector<16x1xf32>
    %cst_11 = arith.constant dense<0.000000e+00> : vector<16x128xf32>
    %12 = tpu.matmul %10, %9, %cst_11 {dimension_numbers = #tpu.dot_dimension_numbers<[1], [0], [0], [1], [0, 0, 1, 1], [], []>} : vector<16x16xbf16>, vector<16x128xbf16>, vector<16x128xf32> -> vector<16x128xf32>
    %13 = vector.broadcast %11 : vector<16x1xf32> to vector<16x128xf32>
    %14 = arith.addf %12, %13 : vector<16x128xf32>
    %cst_12 = arith.constant 0.000000e+00 : f32
    %15 = vector.broadcast %cst_12 : f32 to vector<16x128xf32>
    %16 = arith.maximumf %14, %15 : vector<16x128xf32>
    %17 = arith.truncf %16 : vector<16x128xf32> to vector<16x128xbf16>
    %c0_13 = arith.constant 0 : index
    %c0_14 = arith.constant 0 : index
    %18 = vector.load %arg7[%c0_13, %c0_14] : memref<32x16xbf16, #tpu.memory_space<vmem>>, vector<32x16xbf16>
    %c0_15 = arith.constant 0 : index
    %c0_16 = arith.constant 0 : index
    %19 = vector.load %arg8[%c0_15, %c0_16] : memref<32x1xf32, #tpu.memory_space<vmem>>, vector<32x1xf32>
    %cst_17 = arith.constant dense<0.000000e+00> : vector<32x128xf32>
    %20 = tpu.matmul %18, %17, %cst_17 {dimension_numbers = #tpu.dot_dimension_numbers<[1], [0], [0], [1], [0, 0, 1, 1], [], []>} : vector<32x16xbf16>, vector<16x128xbf16>, vector<32x128xf32> -> vector<32x128xf32>
    %21 = vector.broadcast %19 : vector<32x1xf32> to vector<32x128xf32>
    %22 = arith.addf %20, %21 : vector<32x128xf32>
    %cst_18 = arith.constant 0.000000e+00 : f32
    %23 = vector.broadcast %cst_18 : f32 to vector<32x128xf32>
    %24 = arith.maximumf %22, %23 : vector<32x128xf32>
    %c0_i32 = arith.constant 0 : i32
    %25 = arith.cmpi eq, %arg1, %c0_i32 : i32
    %26 = arith.extui %25 : i1 to i32
    %c0_i32_19 = arith.constant 0 : i32
    %27 = arith.cmpi ne, %26, %c0_i32_19 : i32
    scf.if %27 {
      %c0_23 = arith.constant 0 : index
      %c0_24 = arith.constant 0 : index
      %34 = vector.load %arg10[%c0_23, %c0_24] : memref<32x128xf32, #tpu.memory_space<vmem>>, vector<32x128xf32>
      tpu.vector_store %arg10[%c0_23, %c0_24], %24 {strides = array<i32>} : memref<32x128xf32, #tpu.memory_space<vmem>>, vector<32x128xf32>,
    } else {
    }
    %c0_i32_20 = arith.constant 0 : i32
    %28 = arith.cmpi sgt, %arg1, %c0_i32_20 : i32
    %29 = arith.extui %28 : i1 to i32
    %c0_i32_21 = arith.constant 0 : i32
    %30 = arith.cmpi ne, %29, %c0_i32_21 : i32
    scf.if %30 {
      %c0_23 = arith.constant 0 : index
      %c0_24 = arith.constant 0 : index
      %34 = vector.load %arg10[%c0_23, %c0_24] : memref<32x128xf32, #tpu.memory_space<vmem>>, vector<32x128xf32>
      %35 = arith.maximumf %34, %24 : vector<32x128xf32>
      %c0_25 = arith.constant 0 : index
      %c0_26 = arith.constant 0 : index
      %36 = vector.load %arg10[%c0_25, %c0_26] : memref<32x128xf32, #tpu.memory_space<vmem>>, vector<32x128xf32>
      tpu.vector_store %arg10[%c0_25, %c0_26], %35 {strides = array<i32>} : memref<32x128xf32, #tpu.memory_space<vmem>>, vector<32x128xf32>,
    } else {
    }
    %c7_i32 = arith.constant 7 : i32
    %31 = arith.cmpi eq, %arg1, %c7_i32 : i32
    %32 = arith.extui %31 : i1 to i32
    %c0_i32_22 = arith.constant 0 : i32
    %33 = arith.cmpi ne, %32, %c0_i32_22 : i32
    scf.if %33 {
      %c0_23 = arith.constant 0 : index
      %c0_24 = arith.constant 0 : index
      %34 = vector.load %arg10[%c0_23, %c0_24] : memref<32x128xf32, #tpu.memory_space<vmem>>, vector<32x128xf32>
      %c0_25 = arith.constant 0 : index
      %c0_26 = arith.constant 0 : index
      %35 = vector.load %arg9[%c0_25, %c0_26] : memref<32x128xf32, #tpu.memory_space<vmem>>, vector<32x128xf32>
      tpu.vector_store %arg9[%c0_25, %c0_26], %34 {strides = array<i32>} : memref<32x128xf32, #tpu.memory_space<vmem>>, vector<32x128xf32>,
    } else {
    }
    return
  }
  func.func @transform_0(%arg0: i32, %arg1: i32) -> (i32, i32, i32) {
    %c0_i32 = arith.constant 0 : i32
    %c0_i32_0 = arith.constant 0 : i32
    return %arg1, %c0_i32, %arg0 : i32, i32, i32
  }
  func.func @transform_1(%arg0: i32, %arg1: i32) -> (i32, i32) {
    %c0_i32 = arith.constant 0 : i32
    %c0_i32_0 = arith.constant 0 : i32
    %c0_i32_1 = arith.constant 0 : i32
    return %c0_i32, %c0_i32_0 : i32, i32
  }
  func.func @transform_2(%arg0: i32, %arg1: i32) -> (i32, i32) {
    %c0_i32 = arith.constant 0 : i32
    %c0_i32_0 = arith.constant 0 : i32
    %c0_i32_1 = arith.constant 0 : i32
    return %c0_i32, %c0_i32_0 : i32, i32
  }
  func.func @transform_3(%arg0: i32, %arg1: i32) -> (i32, i32) {
    %c0_i32 = arith.constant 0 : i32
    %c0_i32_0 = arith.constant 0 : i32
    %c0_i32_1 = arith.constant 0 : i32
    return %c0_i32, %c0_i32_0 : i32, i32
  }
  func.func @transform_4(%arg0: i32, %arg1: i32) -> (i32, i32) {
    %c0_i32 = arith.constant 0 : i32
    %c0_i32_0 = arith.constant 0 : i32
    %c0_i32_1 = arith.constant 0 : i32
    return %c0_i32, %c0_i32_0 : i32, i32
  }
  func.func @transform_5(%arg0: i32, %arg1: i32) -> (i32, i32) {
    %c0_i32 = arith.constant 0 : i32
    %c0_i32_0 = arith.constant 0 : i32
    %c0_i32_1 = arith.constant 0 : i32
    return %c0_i32, %c0_i32_0 : i32, i32
  }
  func.func @transform_6(%arg0: i32, %arg1: i32) -> (i32, i32) {
    %c0_i32 = arith.constant 0 : i32
    %c0_i32_0 = arith.constant 0 : i32
    %c0_i32_1 = arith.constant 0 : i32
    return %c0_i32, %c0_i32_0 : i32, i32
  }
  func.func @transform_7(%arg0: i32, %arg1: i32) -> (i32, i32) {
    %c0_i32 = arith.constant 0 : i32
    %c0_i32_0 = arith.constant 0 : i32
    return %c0_i32, %arg0 : i32, i32
  }
}

</mosaic_0001>

<llo_original>
// kernel: tpu_custom_call.1
$region0: #{tpu_custom_call.1}
  #allocation0 [shape = 'u32[]', space=smem, size = 0x4, offset = 0x4, fixed_abs, tag = 'smem constant byte address 0x4 - core index']
  #allocation1 [shape = 'u32[144,128]{1,0:T(1,128)}', space=vmem, size = 0x12000, scoped, tag = 'internal scratch']
  #allocation2 [shape = 'f32[32,128]{1,0:T(8,128)}', space=vmem, size = 0x4000, scoped, tag = 'scratch operand']
  %s0 = inlined_call_operand.vmem [shape: bf16[8,7,128], index: 0, kind: input, shape index: {}]
  %s1 = inlined_call_operand.vmem [shape: bf16[16,7], index: 1, kind: input, shape index: {}]
  %s2 = inlined_call_operand.vmem [shape: f32[16,1], index: 2, kind: input, shape index: {}]
  %s3 = inlined_call_operand.vmem [shape: bf16[16,16], index: 3, kind: input, shape index: {}]
  %s4 = inlined_call_operand.vmem [shape: f32[16,1], index: 4, kind: input, shape index: {}]
  %s5 = inlined_call_operand.vmem [shape: bf16[32,16], index: 5, kind: input, shape index: {}]
  %s6 = inlined_call_operand.vmem [shape: f32[32,1], index: 6, kind: input, shape index: {}]
  %s7 = inlined_call_operand.hbm [shape: f32[32,128], index: 7, kind: output, shape index: {}]
  %s8 = sld [smem:[#allocation0]]
  $region73: #{tpu_custom_call.1} parent=0
    _
  %s10 = ssub.s32 1, %s8
  %s11 = scalar_select 0, %s10, %s8
  $region1: #{tpu_custom_call.1} parent=0
    #allocation3 [shape = 'u8[16384]{0}', space=vmem, size = 0x4000, scoped, tag = 'output window, operand 0, single buffered']
    #allocation4 [shape = 's32[2]{0}', space=sflag, size = 0x8, scoped, tag = 'scoped memory for tpu_custom_call.1']
    %12 = vsyncpa [#allocation4], 0
    loop: start=0, step=1, limit=10
    $region2: #{tpu_custom_call.1} parent=1 // loop_pre_header
      _
    $region3: #{tpu_custom_call.1} parent=1 // loop_header
      %s14 = sphi 0, %s18
      %p15 = scmp.ge.s32.totalorder %s14, 10
      %s21 = sphi 0, %s33
      %s22 = sphi 0, %s29
      %s23 = sphi 0, %s21
      %s24 = sphi 0, %s22
      %s25 = sphi 0, %s23
      %s26 = sphi 0, %s24
      %s38 = sphi 0, %s40
      %s41 = sphi 0, %s38
      %s42 = sphi 0, %s41
      %s58 = sphi 0, %s42
      %s62 = sphi 0, %s62
      %s64 = sphi 0, %s62
      %s65 = sphi 0, %s64
      %s79 = sphi 0, %s65
      %s83 = sphi 0, %s83
      %s85 = sphi 0, %s83
      %s86 = sphi 0, %s85
      %s100 = sphi 0, %s86
      %s104 = sphi 0, %s104
      %s106 = sphi 0, %s104
      %s107 = sphi 0, %s106
      %s121 = sphi 0, %s107
      %s125 = sphi 0, %s125
      %s127 = sphi 0, %s125
      %s128 = sphi 0, %s127
      %s142 = sphi 0, %s128
      %s146 = sphi 0, %s146
      %s148 = sphi 0, %s146
      %s149 = sphi 0, %s148
      %s163 = sphi 0, %s149
      %s167 = sphi 0, %s167
      %s169 = sphi 0, %s167
      %s170 = sphi 0, %s169
      %s184 = sphi 0, %s170
      %s190 = sphi 0, %s192
      %s193 = sphi 0, %s190
      %s194 = sphi 0, %s193
      %s210 = sphi 0, %s194
    $region4: #{tpu_custom_call.1} parent=1 // loop_header_branch
      %17 = sbr.rel (%p15) target = $region8
    $region5: #{tpu_custom_call.1} parent=1 // loop_body
      %s19 = ssub.s32 %s14, 1
      %s20 = ssub.s32 %s14, 2
      %s27 = sadd.s32 1, %s22
      %p28 = scmp.ge.s32.totalorder %s27, 8
      %s29 = scalar_select %p28, 0, %s27
      %s30 = sadd.s32 1, %s21
      %s31 = scalar_select %p28, %s30, %s21
      %p32 = scmp.ge.s32.totalorder %s31, 1
      %s33 = scalar_select %p32, 0, %s31
      %s34 = ssub.s32 %s22, %s29
      %s35 = ssub.s32 %s21, %s33
      %s36 = sor.u32 %s34, %s35
      %p37 = scmp.eq.s32.totalorder %s36, 0
      %s39 = sadd.s32 %s38, 1
      %s40 = scalar_select %p37, %s38, %s39
      %p43 = pneg %p37
      %p44 = scmp.eq.s32.totalorder %s14, 7
      %p45 = por %p43, %p44
      %p46 = scmp.ne.s32.totalorder %s38, %s41
      %p47 = scmp.eq.s32.totalorder %s14, 0
      %p48 = por %p46, %p47
      %p49 = scmp.ne.s32.totalorder %s38, %s41
      %p50 = scmp.eq.s32.totalorder %s19, 7
      %p51 = por %p49, %p50
      %p52 = scmp.ne.s32.totalorder %s41, %s42
      %p53 = scmp.eq.s32.totalorder %s19, 0
      %p54 = por %p52, %p53
      %p55 = scmp.ne.s32.totalorder %s41, %s42
      %p56 = scmp.eq.s32.totalorder %s20, 7
      %p57 = por %p55, %p56
      %p59 = scmp.ne.s32.totalorder %s42, %s58
      %p60 = scmp.eq.s32.totalorder %s20, 0
      %p61 = por %p59, %p60
      %s63 = sadd.s32 %s62, 1
      %p66 = scmp.eq.s32.totalorder %s14, 7
      %p67 = scmp.ne.s32.totalorder %s62, %s64
      %p68 = scmp.eq.s32.totalorder %s14, 0
      %p69 = por %p67, %p68
      %p70 = scmp.ne.s32.totalorder %s62, %s64
      %p71 = scmp.eq.s32.totalorder %s19, 7
      %p72 = por %p70, %p71
      %p73 = scmp.ne.s32.totalorder %s64, %s65
      %p74 = scmp.eq.s32.totalorder %s19, 0
      %p75 = por %p73, %p74
      %p76 = scmp.ne.s32.totalorder %s64, %s65
      %p77 = scmp.eq.s32.totalorder %s20, 7
      %p78 = por %p76, %p77
      %p80 = scmp.ne.s32.totalorder %s65, %s79
      %p81 = scmp.eq.s32.totalorder %s20, 0
      %p82 = por %p80, %p81
      %s84 = sadd.s32 %s83, 1
      %p87 = scmp.eq.s32.totalorder %s14, 7
      %p88 = scmp.ne.s32.totalorder %s83, %s85
      %p89 = scmp.eq.s32.totalorder %s14, 0
      %p90 = por %p88, %p89
      %p91 = scmp.ne.s32.totalorder %s83, %s85
      %p92 = scmp.eq.s32.totalorder %s19, 7
      %p93 = por %p91, %p92
      %p94 = scmp.ne.s32.totalorder %s85, %s86
      %p95 = scmp.eq.s32.totalorder %s19, 0
      %p96 = por %p94, %p95
      %p97 = scmp.ne.s32.totalorder %s85, %s86
      %p98 = scmp.eq.s32.totalorder %s20, 7
      %p99 = por %p97, %p98
      %p101 = scmp.ne.s32.totalorder %s86, %s100
      %p102 = scmp.eq.s32.totalorder %s20, 0
      %p103 = por %p101, %p102
      %s105 = sadd.s32 %s104, 1
      %p108 = scmp.eq.s32.totalorder %s14, 7
      %p109 = scmp.ne.s32.totalorder %s104, %s106
      %p110 = scmp.eq.s32.totalorder %s14, 0
      %p111 = por %p109, %p110
      %p112 = scmp.ne.s32.totalorder %s104, %s106
      %p113 = scmp.eq.s32.totalorder %s19, 7
      %p114 = por %p112, %p113
      %p115 = scmp.ne.s32.totalorder %s106, %s107
      %p116 = scmp.eq.s32.totalorder %s19, 0
      %p117 = por %p115, %p116
      %p118 = scmp.ne.s32.totalorder %s106, %s107
      %p119 = scmp.eq.s32.totalorder %s20, 7
      %p120 = por %p118, %p119
      %p122 = scmp.ne.s32.totalorder %s107, %s121
      %p123 = scmp.eq.s32.totalorder %s20, 0
      %p124 = por %p122, %p123
      %s126 = sadd.s32 %s125, 1
      %p129 = scmp.eq.s32.totalorder %s14, 7
      %p130 = scmp.ne.s32.totalorder %s125, %s127
      %p131 = scmp.eq.s32.totalorder %s14, 0
      %p132 = por %p130, %p131
      %p133 = scmp.ne.s32.totalorder %s125, %s127
      %p134 = scmp.eq.s32.totalorder %s19, 7
      %p135 = por %p133, %p134
      %p136 = scmp.ne.s32.totalorder %s127, %s128
      %p137 = scmp.eq.s32.totalorder %s19, 0
      %p138 = por %p136, %p137
      %p139 = scmp.ne.s32.totalorder %s127, %s128
      %p140 = scmp.eq.s32.totalorder %s20, 7
      %p141 = por %p139, %p140
      %p143 = scmp.ne.s32.totalorder %s128, %s142
      %p144 = scmp.eq.s32.totalorder %s20, 0
      %p145 = por %p143, %p144
      %s147 = sadd.s32 %s146, 1
      %p150 = scmp.eq.s32.totalorder %s14, 7
      %p151 = scmp.ne.s32.totalorder %s146, %s148
      %p152 = scmp.eq.s32.totalorder %s14, 0
      %p153 = por %p151, %p152
      %p154 = scmp.ne.s32.totalorder %s146, %s148
      %p155 = scmp.eq.s32.totalorder %s19, 7
      %p156 = por %p154, %p155
      %p157 = scmp.ne.s32.totalorder %s148, %s149
      %p158 = scmp.eq.s32.totalorder %s19, 0
      %p159 = por %p157, %p158
      %p160 = scmp.ne.s32.totalorder %s148, %s149
      %p161 = scmp.eq.s32.totalorder %s20, 7
      %p162 = por %p160, %p161
      %p164 = scmp.ne.s32.totalorder %s149, %s163
      %p165 = scmp.eq.s32.totalorder %s20, 0
      %p166 = por %p164, %p165
      %s168 = sadd.s32 %s167, 1
      %p171 = scmp.eq.s32.totalorder %s14, 7
      %p172 = scmp.ne.s32.totalorder %s167, %s169
      %p173 = scmp.eq.s32.totalorder %s14, 0
      %p174 = por %p172, %p173
      %p175 = scmp.ne.s32.totalorder %s167, %s169
      %p176 = scmp.eq.s32.totalorder %s19, 7
      %p177 = por %p175, %p176
      %p178 = scmp.ne.s32.totalorder %s169, %s170
      %p179 = scmp.eq.s32.totalorder %s19, 0
      %p180 = por %p178, %p179
      %p181 = scmp.ne.s32.totalorder %s169, %s170
      %p182 = scmp.eq.s32.totalorder %s20, 7
      %p183 = por %p181, %p182
      %p185 = scmp.ne.s32.totalorder %s170, %s184
      %p186 = scmp.eq.s32.totalorder %s20, 0
      %p187 = por %p185, %p186
      %s188 = ssub.s32 %s21, %s33
      %p189 = scmp.eq.s32.totalorder %s188, 0
      %s191 = sadd.s32 %s190, 1
      %s192 = scalar_select %p189, %s190, %s191
      %p195 = pneg %p189
      %p196 = scmp.eq.s32.totalorder %s14, 7
      %p197 = por %p195, %p196
      %p198 = scmp.ne.s32.totalorder %s190, %s193
      %p199 = scmp.eq.s32.totalorder %s14, 0
      %p200 = por %p198, %p199
      %p201 = scmp.ne.s32.totalorder %s190, %s193
      %p202 = scmp.eq.s32.totalorder %s19, 7
      %p203 = por %p201, %p202
      %p204 = scmp.ne.s32.totalorder %s193, %s194
      %p205 = scmp.eq.s32.totalorder %s19, 0
      %p206 = por %p204, %p205
      %p207 = scmp.ne.s32.totalorder %s193, %s194
      %p208 = scmp.eq.s32.totalorder %s20, 7
      %p209 = por %p207, %p208
      %p211 = scmp.ne.s32.totalorder %s194, %s210
      %p212 = scmp.eq.s32.totalorder %s20, 0
      %p213 = por %p211, %p212
      %p214 = scmp.le.s32.totalorder 1, %s14
      %p215 = scmp.lt.s32.totalorder %s14, 9
      %p216 = pnand %p214, %p215
      %p217 = pneg %p216
      // Predicated region
      $region9: #{tpu_custom_call.1} parent=5 // pred_check
        _
      $region10: #{tpu_custom_call.1} parent=5 // pred_check_branch
        %219 = sbr.rel (%p216) target = $region12
      $region11: #{tpu_custom_call.1} parent=5 // pred_region
        %s220 = ssub.s32 %s14, 1
        // Predicated region
        $region13: #{tpu_custom_call.1} parent=11 // pred_check
          %p221 = pneg %p75
        $region14: #{tpu_custom_call.1} parent=11 // pred_check_branch
          %223 = sbr.rel (%p221) target = $region16
        $region15: #{tpu_custom_call.1} parent=11 // pred_region
          _
        $region16: #{tpu_custom_call.1} parent=11 // pred_fallthru
          _
        // Predicated region
        $region17: #{tpu_custom_call.1} parent=11 // pred_check
          %p224 = pneg %p96
        $region18: #{tpu_custom_call.1} parent=11 // pred_check_branch
          %226 = sbr.rel (%p224) target = $region20
        $region19: #{tpu_custom_call.1} parent=11 // pred_region
          _
        $region20: #{tpu_custom_call.1} parent=11 // pred_fallthru
          _
        // Predicated region
        $region21: #{tpu_custom_call.1} parent=11 // pred_check
          %p227 = pneg %p117
        $region22: #{tpu_custom_call.1} parent=11 // pred_check_branch
          %229 = sbr.rel (%p227) target = $region24
        $region23: #{tpu_custom_call.1} parent=11 // pred_region
          _
        $region24: #{tpu_custom_call.1} parent=11 // pred_fallthru
          _
        // Predicated region
        $region25: #{tpu_custom_call.1} parent=11 // pred_check
          %p230 = pneg %p138
        $region26: #{tpu_custom_call.1} parent=11 // pred_check_branch
          %232 = sbr.rel (%p230) target = $region28
        $region27: #{tpu_custom_call.1} parent=11 // pred_region
          _
        $region28: #{tpu_custom_call.1} parent=11 // pred_fallthru
          _
        // Predicated region
        $region29: #{tpu_custom_call.1} parent=11 // pred_check
          %p233 = pneg %p159
        $region30: #{tpu_custom_call.1} parent=11 // pred_check_branch
          %235 = sbr.rel (%p233) target = $region32
        $region31: #{tpu_custom_call.1} parent=11 // pred_region
          _
        $region32: #{tpu_custom_call.1} parent=11 // pred_fallthru
          _
        // Predicated region
        $region33: #{tpu_custom_call.1} parent=11 // pred_check
          %p236 = pneg %p180
        $region34: #{tpu_custom_call.1} parent=11 // pred_check_branch
          %238 = sbr.rel (%p236) target = $region36
        $region35: #{tpu_custom_call.1} parent=11 // pred_region
          _
        $region36: #{tpu_custom_call.1} parent=11 // pred_fallthru
          _
      $region12: #{tpu_custom_call.1} parent=5 // pred_fallthru
        _
      %p239 = scmp.lt.s32.totalorder %s14, 8
      // Predicated region
      $region37: #{tpu_custom_call.1} parent=5 // pred_check
        %p240 = pneg %p239
      $region38: #{tpu_custom_call.1} parent=5 // pred_check_branch
        %242 = sbr.rel (%p240) target = $region40
      $region39: #{tpu_custom_call.1} parent=5 // pred_region
        // Predicated region
        $region41: #{tpu_custom_call.1} parent=39 // pred_check
          %p243 = pneg %p48
        $region42: #{tpu_custom_call.1} parent=39 // pred_check_branch
          %245 = sbr.rel (%p243) target = $region44
        $region43: #{tpu_custom_call.1} parent=39 // pred_region
          %p246 = scmp.lt.s32.totalorder %s22, 7
          %s247 = scalar_select %p246, %s22, 7
          %p248 = scmp.lt.s32.totalorder %s21, 0
          %s249 = scalar_select %p248, %s21, 0
          %s250 = sadd.s32 %s249, %s247
          %s251 = smul.addr %s250, 4
          %s252 = scalar_lea.vmem %s0, %s251
        $region44: #{tpu_custom_call.1} parent=39 // pred_fallthru
          _
      $region40: #{tpu_custom_call.1} parent=5 // pred_fallthru
        _
      %p253 = scmp.le.s32.totalorder 1, %s14
      %p254 = scmp.lt.s32.totalorder %s14, 9
      %p255 = pnand %p253, %p254
      %p256 = pneg %p255
      // Predicated region
      $region45: #{tpu_custom_call.1} parent=5 // pred_check
        _
      $region46: #{tpu_custom_call.1} parent=5 // pred_check_branch
        %258 = sbr.rel (%p255) target = $region48
      $region47: #{tpu_custom_call.1} parent=5 // pred_region
        %s259 = ssub.s32 %s14, 1
        %p260 = scmp.lt.s32.totalorder %s24, 7
        %s261 = scalar_select %p260, %s24, 7
        %p262 = scmp.lt.s32.totalorder %s23, 0
        %s263 = scalar_select %p262, %s23, 0
        %s264 = sadd.s32 %s263, %s261
        %s265 = smul.addr %s264, 4
        %s266 = scalar_lea.vmem %s0, %s265
        %p267 = pneg %p54
        %p268 = pneg %p51
        %p269 = pneg %p75
        %p270 = pneg %p72
        %p271 = pneg %p96
        %p272 = pneg %p93
        %p273 = pneg %p117
        %p274 = pneg %p114
        %p275 = pneg %p138
        %p276 = pneg %p135
        %p277 = pneg %p159
        %p278 = pneg %p156
        %p279 = pneg %p180
        %p280 = pneg %p177
        %p281 = pneg %p206
        %p282 = pneg %p203
        %p283 = scmp.lt.s32.totalorder %s24, 7
        %s284 = scalar_select %p283, %s24, 7
        %p285 = scmp.lt.s32.totalorder %s23, 0
        %s286 = scalar_select %p285, %s23, 0
        %s287 = sadd.s32 %s286, %s284
        %s288 = smul.addr %s287, 4
        %s289 = scalar_lea.vmem %s0, %s288
        %v291 = vld [vmem:[%s289] sm:$0xf]
        %v292 = vld [vmem:[%s1] sm:$0xf]
        %v293 = vld [vmem:[%s1 + $0x4] sm:$0xf]
        %v294 = vld [vmem:[%s2] sm:$0xff]
        %v295 = vld [vmem:[%s2 + $0x8] sm:$0xff]
        %297 = vset.pattern.permute.xlu0 0
        %298 = vperm.xlu0 %297, %v294
        %v299 = vpop.permute.xlu0 %298
        %302 = vset.pattern.permute.xlu0 0
        %303 = vperm.xlu0 %302, %v295
        %v304 = vpop.permute.xlu0 %303
        %v308 = vunpack.c.l.b16 %v292
        %v309 = vunpack.c.l.b16 %v293
        %v310 = vpack.c.b16 %v309, %v308
        %vm311 = vcmask 56320
        %v313 = vsel %vm311, %v310, 0
        %vm315 = vcmask 1042432
        %vm316 = vcmask 1043456
        %v317 = vsel %vm315, 4294967295, 65535
        %v318 = vsel %vm316, %v317, 0
        %v320 = vand.u32 %v291, %v318
        %322 = vmatprep.subr.bf16.mxu0 0
        %323 = vmatpush1.bf16.msra.mxu0 0
        %324 = vmatprep.subr.bf16.mxu0 0
        %325 = vmatpush1.bf16.msra.mxu0 0
        %326 = vmatprep.subr.bf16.mxu0 0
        %327 = vmatpush1.bf16.msra.mxu0 0
        %328 = vmatprep.subr.bf16.mxu0 0
        %329 = vmatpush1.bf16.msra.mxu0 0
        %330 = vmatprep.subr.bf16.mxu0 0
        %331 = vmatpush1.bf16.msra.mxu0 0
        %332 = vmatprep.subr.bf16.mxu0 0
        %333 = vmatpush1.bf16.msra.mxu0 0
        %334 = vmatprep.subr.bf16.mxu0 0
        %335 = vmatpush1.bf16.msra.mxu0 0
        %336 = vmatprep.subr.bf16.mxu0 0
        %337 = vmatpush1.bf16.msra.mxu0 %v320
        %338 = vmatprep.subr.bf16.mxu0 0
        %339 = vmatpush2.bf16.msra.mxu0 0
        %340 = vmatprep.subr.bf16.mxu0 0
        %341 = vmatpush2.bf16.msra.mxu0 0
        %342 = vmatprep.subr.bf16.mxu0 0
        %343 = vmatpush2.bf16.msra.mxu0 0
        %344 = vmatprep.subr.bf16.mxu0 0
        %345 = vmatpush2.bf16.msra.mxu0 0
        %346 = vmatprep.subr.bf16.mxu0 0
        %347 = vmatpush2.bf16.msra.mxu0 0
        %348 = vmatprep.subr.bf16.mxu0 0
        %349 = vmatpush2.bf16.msra.mxu0 0
        %350 = vmatprep.subr.bf16.mxu0 0
        %351 = vmatpush2.bf16.msra.mxu0 0
        %352 = vmatprep.subr.bf16.mxu0 0
        %353 = vmatpush2.bf16.msra.mxu0 0
        %354 = vmatprep.mubr.bf16.mxu0 0
        %355 = vmatmul.mubr.bf16.gmra.mxu0 %v313
        %v356 = vpop.f32.mrf.mxu0
        %v357 = vadd.f32 %v299, %v356
        %v358 = vpop.f32.mrf.mxu0
        %v359 = vpop.f32.mrf.mxu0
        %v360 = vadd.f32 %v304, %v359
        %v361 = vpop.f32.mrf.mxu0
        %362 = vdwg.mxu0
        %v363 = vmax.f32 %v357, 0.0
        %v364 = vmax.f32 %v360, 0.0
        %v365 = vpack.c.bf16 %v364, %v363
        %v366 = vld [vmem:[%s3] sm:$0xf]
        %v367 = vld [vmem:[%s3 + $0x4] sm:$0xf]
        %v368 = vld [vmem:[%s4] sm:$0xff]
        %v369 = vld [vmem:[%s4 + $0x8] sm:$0xff]
        %371 = vset.pattern.permute.xlu0 0
        %372 = vperm.xlu0 %371, %v368
        %v373 = vpop.permute.xlu0 %372
        %376 = vset.pattern.permute.xlu0 0
        %377 = vperm.xlu0 %376, %v369
        %v378 = vpop.permute.xlu0 %377
        %v382 = vunpack.c.l.b16 %v366
        %v383 = vunpack.c.l.b16 %v367
        %v384 = vpack.c.b16 %v383, %v382
        %vm385 = vcmask 130048
        %v387 = vsel %vm385, %v384, 0
        %389 = vmatprep.subr.bf16.mxu0 0
        %390 = vmatpush1.bf16.msra.mxu0 0
        %391 = vmatprep.subr.bf16.mxu0 0
        %392 = vmatpush1.bf16.msra.mxu0 0
        %393 = vmatprep.subr.bf16.mxu0 0
        %394 = vmatpush1.bf16.msra.mxu0 0
        %395 = vmatprep.subr.bf16.mxu0 0
        %396 = vmatpush1.bf16.msra.mxu0 0
        %397 = vmatprep.subr.bf16.mxu0 0
        %398 = vmatpush1.bf16.msra.mxu0 0
        %399 = vmatprep.subr.bf16.mxu0 0
        %400 = vmatpush1.bf16.msra.mxu0 0
        %401 = vmatprep.subr.bf16.mxu0 0
        %402 = vmatpush1.bf16.msra.mxu0 0
        %403 = vmatprep.subr.bf16.mxu0 0
        %404 = vmatpush1.bf16.msra.mxu0 %v365
        %405 = vmatprep.subr.bf16.mxu0 0
        %406 = vmatpush2.bf16.msra.mxu0 0
        %407 = vmatprep.subr.bf16.mxu0 0
        %408 = vmatpush2.bf16.msra.mxu0 0
        %409 = vmatprep.subr.bf16.mxu0 0
        %410 = vmatpush2.bf16.msra.mxu0 0
        %411 = vmatprep.subr.bf16.mxu0 0
        %412 = vmatpush2.bf16.msra.mxu0 0
        %413 = vmatprep.subr.bf16.mxu0 0
        %414 = vmatpush2.bf16.msra.mxu0 0
        %415 = vmatprep.subr.bf16.mxu0 0
        %416 = vmatpush2.bf16.msra.mxu0 0
        %417 = vmatprep.subr.bf16.mxu0 0
        %418 = vmatpush2.bf16.msra.mxu0 0
        %419 = vmatprep.subr.bf16.mxu0 0
        %420 = vmatpush2.bf16.msra.mxu0 0
        %421 = vmatprep.mubr.bf16.mxu0 0
        %422 = vmatmul.mubr.bf16.gmra.mxu0 %v387
        %v423 = vpop.f32.mrf.mxu0
        %v424 = vadd.f32 %v373, %v423
        %v425 = vpop.f32.mrf.mxu0
        %v426 = vpop.f32.mrf.mxu0
        %v427 = vadd.f32 %v378, %v426
        %v428 = vpop.f32.mrf.mxu0
        %429 = vdwg.mxu0
        %v430 = vmax.f32 %v424, 0.0
        %v431 = vmax.f32 %v427, 0.0
        %v432 = vpack.c.bf16 %v431, %v430
        %v433 = vld [vmem:[%s5] sm:$0xf]
        %v434 = vld [vmem:[%s5 + $0x4] sm:$0xf]
        %v435 = vld [vmem:[%s5 + $0x8] sm:$0xf]
        %v436 = vld [vmem:[%s5 + $0xc] sm:$0xf]
        %v437 = vld [vmem:[%s6] sm:$0xff]
        %v438 = vld [vmem:[%s6 + $0x8] sm:$0xff]
        %v439 = vld [vmem:[%s6 + $0x10] sm:$0xff]
        %v440 = vld [vmem:[%s6 + $0x18] sm:$0xff]
        %442 = vset.pattern.permute.xlu0 0
        %443 = vperm.xlu0 %442, %v437
        %v444 = vpop.permute.xlu0 %443
        %447 = vset.pattern.permute.xlu0 0
        %448 = vperm.xlu0 %447, %v438
        %v449 = vpop.permute.xlu0 %448
        %452 = vset.pattern.permute.xlu0 0
        %453 = vperm.xlu0 %452, %v439
        %v454 = vpop.permute.xlu0 %453
        %457 = vset.pattern.permute.xlu0 0
        %458 = vperm.xlu0 %457, %v440
        %v459 = vpop.permute.xlu0 %458
        %v465 = vunpack.c.l.b16 %v433
        %v466 = vunpack.c.l.b16 %v434
        %v467 = vunpack.c.l.b16 %v435
        %v468 = vunpack.c.l.b16 %v436
        %v469 = vpack.c.b16 %v466, %v465
        %v470 = vpack.c.b16 %v468, %v467
        %v472 = vsel %vm385, %v469, 0
        %v475 = vsel %vm385, %v470, 0
        %477 = vmatprep.subr.bf16.mxu0 0
        %478 = vmatpush1.bf16.msra.mxu0 0
        %479 = vmatprep.subr.bf16.mxu0 0
        %480 = vmatpush1.bf16.msra.mxu0 0
        %481 = vmatprep.subr.bf16.mxu0 0
        %482 = vmatpush1.bf16.msra.mxu0 0
        %483 = vmatprep.subr.bf16.mxu0 0
        %484 = vmatpush1.bf16.msra.mxu0 0
        %485 = vmatprep.subr.bf16.mxu0 0
        %486 = vmatpush1.bf16.msra.mxu0 0
        %487 = vmatprep.subr.bf16.mxu0 0
        %488 = vmatpush1.bf16.msra.mxu0 0
        %489 = vmatprep.subr.bf16.mxu0 0
        %490 = vmatpush1.bf16.msra.mxu0 0
        %491 = vmatprep.subr.bf16.mxu0 0
        %492 = vmatpush1.bf16.msra.mxu0 %v432
        %493 = vmatprep.subr.bf16.mxu0 0
        %494 = vmatpush2.bf16.msra.mxu0 0
        %495 = vmatprep.subr.bf16.mxu0 0
        %496 = vmatpush2.bf16.msra.mxu0 0
        %497 = vmatprep.subr.bf16.mxu0 0
        %498 = vmatpush2.bf16.msra.mxu0 0
        %499 = vmatprep.subr.bf16.mxu0 0
        %500 = vmatpush2.bf16.msra.mxu0 0
        %501 = vmatprep.subr.bf16.mxu0 0
        %502 = vmatpush2.bf16.msra.mxu0 0
        %503 = vmatprep.subr.bf16.mxu0 0
        %504 = vmatpush2.bf16.msra.mxu0 0
        %505 = vmatprep.subr.bf16.mxu0 0
        %506 = vmatpush2.bf16.msra.mxu0 0
        %507 = vmatprep.subr.bf16.mxu0 0
        %508 = vmatpush2.bf16.msra.mxu0 0
        %509 = vmatprep.mubr.bf16.mxu0 0
        %510 = vmatmul.mubr.bf16.gmra.mxu0 %v472
        %v511 = vpop.f32.mrf.mxu0
        %v512 = vadd.f32 %v444, %v511
        %v513 = vpop.f32.mrf.mxu0
        %v514 = vpop.f32.mrf.mxu0
        %v515 = vadd.f32 %v449, %v514
        %v516 = vpop.f32.mrf.mxu0
        %517 = vmatprep.mubr.bf16.mxu0 0
        %518 = vmatmul.mubr.bf16.gmra.mxu0 %v475
        %v519 = vpop.f32.mrf.mxu0
        %v520 = vadd.f32 %v454, %v519
        %v521 = vpop.f32.mrf.mxu0
        %v522 = vpop.f32.mrf.mxu0
        %v523 = vadd.f32 %v459, %v522
        %v524 = vpop.f32.mrf.mxu0
        %525 = vdwg.mxu0
        %v526 = vmax.f32 %v512, 0.0
        %v527 = vmax.f32 %v515, 0.0
        %v528 = vmax.f32 %v520, 0.0
        %v529 = vmax.f32 %v523, 0.0
        %p530 = scmp.eq.s32.totalorder %s24, 0
        // Predicated region
        $region49: #{tpu_custom_call.1} parent=47 // pred_check
          %p531 = pneg %p530
        $region50: #{tpu_custom_call.1} parent=47 // pred_check_branch
          %533 = sbr.rel (%p531) target = $region52
        $region51: #{tpu_custom_call.1} parent=47 // pred_region
          %534 = vst [vmem:[#allocation2] sm:$0xff] %v526
          %535 = vst [vmem:[#allocation2 + $0x8] sm:$0xff] %v527
          %536 = vst [vmem:[#allocation2 + $0x10] sm:$0xff] %v528
          %537 = vst [vmem:[#allocation2 + $0x18] sm:$0xff] %v529
        $region52: #{tpu_custom_call.1} parent=47 // pred_fallthru
          _
        %p538 = scmp.gt.s32.totalorder %s24, 0
        // Predicated region
        $region53: #{tpu_custom_call.1} parent=47 // pred_check
          %p539 = pneg %p538
        $region54: #{tpu_custom_call.1} parent=47 // pred_check_branch
          %541 = sbr.rel (%p539) target = $region56
        $region55: #{tpu_custom_call.1} parent=47 // pred_region
          %v542 = vld [vmem:[#allocation2] sm:$0xff]
          %v543 = vld [vmem:[#allocation2 + $0x8] sm:$0xff]
          %v544 = vld [vmem:[#allocation2 + $0x10] sm:$0xff]
          %v545 = vld [vmem:[#allocation2 + $0x18] sm:$0xff]
          %v546 = vmax.f32 %v542, %v526
          %v547 = vmax.f32 %v543, %v527
          %v548 = vmax.f32 %v544, %v528
          %v549 = vmax.f32 %v545, %v529
          %550 = vst [vmem:[#allocation2] sm:$0xff] %v546
          %551 = vst [vmem:[#allocation2 + $0x8] sm:$0xff] %v547
          %552 = vst [vmem:[#allocation2 + $0x10] sm:$0xff] %v548
          %553 = vst [vmem:[#allocation2 + $0x18] sm:$0xff] %v549
        $region56: #{tpu_custom_call.1} parent=47 // pred_fallthru
          _
        %p554 = scmp.eq.s32.totalorder %s24, 7
        // Predicated region
        $region57: #{tpu_custom_call.1} parent=47 // pred_check
          %p555 = pneg %p554
        $region58: #{tpu_custom_call.1} parent=47 // pred_check_branch
          %557 = sbr.rel (%p555) target = $region60
        $region59: #{tpu_custom_call.1} parent=47 // pred_region
          %v558 = vld [vmem:[#allocation2] sm:$0xff]
          %v559 = vld [vmem:[#allocation2 + $0x8] sm:$0xff]
          %v560 = vld [vmem:[#allocation2 + $0x10] sm:$0xff]
          %v561 = vld [vmem:[#allocation2 + $0x18] sm:$0xff]
          %562 = vst [vmem:[#allocation3] sm:$0xff] %v558
          %563 = vst [vmem:[#allocation3 + $0x8] sm:$0xff] %v559
          %564 = vst [vmem:[#allocation3 + $0x10] sm:$0xff] %v560
          %565 = vst [vmem:[#allocation3 + $0x18] sm:$0xff] %v561
        $region60: #{tpu_custom_call.1} parent=47 // pred_fallthru
          _
        // Predicated region
        $region61: #{tpu_custom_call.1} parent=47 // pred_check
          %p566 = pneg %p203
        $region62: #{tpu_custom_call.1} parent=47 // pred_check_branch
          %568 = sbr.rel (%p566) target = $region64
        $region63: #{tpu_custom_call.1} parent=47 // pred_region
          %s570 = ssub.s32 512, 512
          %571 = vsyncadd [#allocation4], %s570
          %s572 = smul.addr %s23, 128
          %s573 = scalar_lea.hbm %s7, %s572
          %s574 = sshll.u32 [#allocation3], 4
          %s575 = int_to_ptr.vmem [resolvable:$true] %s574
          %580 = dma.vmem_to_hbm [thread:$0]  %s575, 512, %s573, [#allocation4], 128, 128, 8
        $region64: #{tpu_custom_call.1} parent=47 // pred_fallthru
          _
        // Predicated region
        $region65: #{tpu_custom_call.1} parent=47 // pred_check
          %p581 = pneg %p203
        $region66: #{tpu_custom_call.1} parent=47 // pred_check_branch
          %583 = sbr.rel (%p581) target = $region68
        $region67: #{tpu_custom_call.1} parent=47 // pred_region
          %584 = dma.done [#allocation4], 512
        $region68: #{tpu_custom_call.1} parent=47 // pred_fallthru
          _
      $region48: #{tpu_custom_call.1} parent=5 // pred_fallthru
        _
      %p585 = scmp.le.s32.totalorder 2, %s14
      // Predicated region
      $region69: #{tpu_custom_call.1} parent=5 // pred_check
        %p586 = pneg %p585
      $region70: #{tpu_custom_call.1} parent=5 // pred_check_branch
        %588 = sbr.rel (%p586) target = $region72
      $region71: #{tpu_custom_call.1} parent=5 // pred_region
        %s589 = ssub.s32 %s14, 2
      $region72: #{tpu_custom_call.1} parent=5 // pred_fallthru
        _
    $region6: #{tpu_custom_call.1} parent=1 // loop_footer
      %s18 = sadd.s32 1, %s14
    $region7: #{tpu_custom_call.1} parent=1 // loop_footer_branch
      %13 = sbr.rel target = $region3
    $region8: #{tpu_custom_call.1} parent=1 // loop_exit
      _
    %590 = vsyncpa [#allocation4], 1
    %s591 = scalar_lea.sflag [#allocation4], 1
    %592 = vsyncpa %s591, 1

</llo_original>
